<compile_context>
chip_gen: v7x
topology: tpu7x:2x2x1
jax: 0.10.0
libtpu: 0.0.40
codegen_flags: <defaults>
</compile_context>

<pallas_src>
import functools

import jax
import jax.numpy as jnp
from jax import lax
from jax.experimental import pallas as pl
from jax.experimental.pallas import tpu as pltpu

LANES = 128           # vreg lane width
MAX_TILE_ROWS = 2048  # rows of 128 lanes per grid step (f32 block = 1 MiB / input)
SUB_ROWS = 256        # in-kernel sub-slab rows (128 KiB f32) -> bounded vreg live ranges


def _round_up(a, b):
    return ((a + b - 1) // b) * b


def _row_multiple(*dtypes):
    """Sublane multiple for the narrowest input dtype (8 f32 / 16 bf16 / 32 int8)."""
    m = 8
    for dt in dtypes:
        itemsize = jnp.dtype(dt).itemsize
        m = max(m, 8 * max(1, 4 // itemsize))
    return m


def _pow_gamma(x, gamma):
    g = float(gamma)
    if g.is_integer():
        gi = int(g)
        if gi == 1:
            return x
        return lax.integer_pow(x, gi)        # gamma=2 -> a single VPU mul
    # Non-integer gamma: exp(gamma*log(x)) — 2 extra EUP ops/elem.
    return x ** g


def _focal_loss_kernel(x_ref, t_ref, out_ref, *, alpha, gamma, n_rows, tile_rows, sub_rows):
    pid = pl.program_id(0)
    num_sub = tile_rows // sub_rows
    # Mask code is only compiled in when the last block can be partial.
    needs_mask = (n_rows % tile_rows) != 0

    w_const = jnp.float32(1.0 - alpha)        # alpha*t + (1-alpha)*(1-t) == w_const + w_t*t
    w_t = jnp.float32(2.0 * alpha - 1.0)

    if needs_mask:
        # Hoisted once (not re-broadcast per loop iteration).
        row_ids = lax.broadcasted_iota(jnp.int32, (sub_rows, 1), 0)
        row_base = pid * tile_rows

    def body(i, acc):
        start = pl.multiple_of(i * sub_rows, sub_rows)
        x = x_ref[pl.ds(start, sub_rows), :].astype(jnp.float32)
        t = t_ref[pl.ds(start, sub_rows), :].astype(jnp.float32)

        # BCE straight from logits, clamped once via clipping x to [-100, 100]
        # (identical to PyTorch's per-term log clamp at -100 within f32 resolution):
        #   bce = relu(xc) - t*xc + log1p(exp(-|xc|))
        xc = jnp.clip(x, -100.0, 100.0)
        sp = jnp.log1p(jnp.exp(-jnp.abs(xc)))
        bce = jnp.maximum(xc, 0.0) - t * xc + sp

        pt = jnp.exp(-bce)
        one_m_pt = jnp.maximum(1.0 - pt, 0.0)       # guard tiny negative rounding
        # TODO(synk): for guaranteed-binary targets, one_m_pt = sigmoid((1-2t)*x) would
        # drop this exp(); kept general here for soft labels.
        focal_w = _pow_gamma(one_m_pt, gamma) * (w_const + w_t * t)
        val = focal_w * bce

        if needs_mask:
            valid = (row_base + start + row_ids) < n_rows
            val = jnp.where(valid, val, 0.0)

        # Fold the sub-slab to an (8, 128) partial with elementwise VPU adds only.
        return acc + val.reshape(sub_rows // 8, 8, LANES).sum(axis=0)

    init = jnp.zeros((8, LANES), jnp.float32)
    if num_sub > 1:
        acc = lax.fori_loop(0, num_sub, body, init, unroll=2)
    else:
        acc = body(0, init)
    out_ref[...] = acc


def focal_loss_bce(inputs, targets, alpha, gamma=2):
    """Pallas TPU FocalLossBCE forward (reduction='mean'). Returns scalar f32."""
    n = int(inputs.size)
    if n == 0:
        return jnp.float32(float("nan"))      # torch .mean() of empty -> nan

    x = inputs.reshape(-1)
    t = targets.reshape(-1)

    # Lane alignment: only if n % 128 != 0 do we pad, and then by <= 127 elements with
    # (x=100, t=1), whose focal contribution underflows to 0.  No whole-chunk padding.
    rem = n % LANES
    if rem:
        pad = LANES - rem
        x = jnp.concatenate([x, jnp.full((pad,), 100, x.dtype)])
        t = jnp.concatenate([t, jnp.full((pad,), 1, t.dtype)])
    n_rows = x.size // LANES
    x = x.reshape(n_rows, LANES)
    t = t.reshape(n_rows, LANES)

    # Tile selection: dtype-native row multiple, >= 2 grid steps when possible
    # (v7x has 2 TensorCores), capped at MAX_TILE_ROWS (1 MiB f32 blocks).
    row_mult = _row_multiple(x.dtype, t.dtype)
    grain = SUB_ROWS if n_rows >= 2 * SUB_ROWS else row_mult
    target_rows = pl.cdiv(n_rows, 2)
    tile_rows = max(grain, min(MAX_TILE_ROWS, _round_up(target_rows, grain)))
    sub_rows = min(SUB_ROWS, tile_rows)
    grid = pl.cdiv(n_rows, tile_rows)

    kernel = functools.partial(
        _focal_loss_kernel,
        alpha=float(alpha),
        gamma=gamma,
        n_rows=n_rows,
        tile_rows=tile_rows,
        sub_rows=sub_rows,
    )

    in_bytes = (x.size * jnp.dtype(x.dtype).itemsize
                + t.size * jnp.dtype(t.dtype).itemsize)
    out_bytes = grid * 8 * LANES * 4
    cost = pl.CostEstimate(flops=20 * n, transcendentals=3 * n,
                           bytes_accessed=in_bytes + out_bytes)

    partial_sums = pl.pallas_call(
        kernel,
        out_shape=jax.ShapeDtypeStruct((grid * 8, LANES), jnp.float32),
        grid_spec=pltpu.PrefetchScalarGridSpec(
            num_scalar_prefetch=0,
            grid=(grid,),
            in_specs=[
                pl.BlockSpec((tile_rows, LANES), lambda i: (i, 0)),  # logits tile
                pl.BlockSpec((tile_rows, LANES), lambda i: (i, 0)),  # targets tile
            ],
            out_specs=pl.BlockSpec((8, LANES), lambda i: (i, 0)),    # per-step partial
        ),
        compiler_params=pltpu.CompilerParams(
            dimension_semantics=("parallel",)),   # independent blocks -> megacore-friendly
        cost_estimate=cost,
    )(x, t)

    # Tiny final reduction + mean over the *unpadded* element count.
    return jnp.sum(partial_sums) / jnp.float32(n)


def _reference(inputs, targets, alpha, gamma=2):
    # Mirrors the PyTorch module: sigmoid -> BCE with -100 log clamp -> focal weight -> mean.
    p = jax.nn.sigmoid(inputs.astype(jnp.float32))
    t = targets.astype(jnp.float32)
    bce = -(t * jnp.maximum(jnp.log(p), -100.0)
            + (1.0 - t) * jnp.maximum(jnp.log(1.0 - p), -100.0))
    pt = jnp.exp(-bce)
    fw = ((1.0 - pt) ** gamma) * (alpha * t + (1.0 - alpha) * (1.0 - t))
    return jnp.mean(fw * bce)


if __name__ == "__main__":
    key = jax.random.PRNGKey(0)
    k1, k2 = jax.random.split(key)

    # Small segmentation-style logit map, NCHW.
    B, C, H, W = 2, 4, 16, 16
    inputs = jax.random.normal(k1, (B, C, H, W), dtype=jnp.float32) * 2.0
    targets = jax.random.bernoulli(k2, 0.3, (B, C, H, W)).astype(jnp.float32)

    alpha = 0.25
    gamma = 2

    loss = focal_loss_bce(inputs, targets, alpha, gamma)
    loss = jax.block_until_ready(loss)

    ref = _reference(inputs, targets, alpha, gamma)
    assert jnp.allclose(loss, ref, rtol=1e-5, atol=1e-5), (loss, ref)

    print("KERNEL_OK")
</pallas_src>

<mosaic_0001>
module attributes {stable_mosaic.version = 11 : i64} {
  func.func @_focal_loss_kernel(%arg0: i32, %arg1: memref<8x128xf32, #tpu.memory_space<vmem>>, %arg2: memref<8x128xf32, #tpu.memory_space<vmem>>, %arg3: memref<8x128xf32, #tpu.memory_space<vmem>>) attributes {dimension_semantics = [#tpu.dimension_semantics<parallel>], iteration_bounds = array<i64: 2>, scalar_prefetch = 0 : i64, scratch_operands = 0 : i64, tpu.core_type = #tpu.core_type<tc>, window_params = [{transform_indices = @transform_0, window_bounds = array<i64: 8, 128>}, {transform_indices = @transform_1, window_bounds = array<i64: 8, 128>}, {transform_indices = @transform_2, window_bounds = array<i64: 8, 128>}]} {
    %cst = arith.constant 0.000000e+00 : f32
    %0 = vector.broadcast %cst : f32 to vector<8x128xf32>
    %c0_i32 = arith.constant 0 : i32
    %1 = tpu.assume_multiple %c0_i32, 8 : i32
    %2 = arith.index_cast %1 : i32 to index
    %c0 = arith.constant 0 : index
    %3 = vector.load %arg1[%2, %c0] : memref<8x128xf32, #tpu.memory_space<vmem>>, vector<8x128xf32>
    %4 = arith.index_cast %1 : i32 to index
    %c0_0 = arith.constant 0 : index
    %5 = vector.load %arg2[%4, %c0_0] : memref<8x128xf32, #tpu.memory_space<vmem>>, vector<8x128xf32>
    %cst_1 = arith.constant -1.000000e+02 : f32
    %cst_2 = arith.constant 1.000000e+02 : f32
    %6 = vector.broadcast %cst_1 : f32 to vector<8x128xf32>
    %7 = arith.maximumf %6, %3 : vector<8x128xf32>
    %8 = vector.broadcast %cst_2 : f32 to vector<8x128xf32>
    %9 = arith.minimumf %8, %7 : vector<8x128xf32>
    %10 = math.absf %9 : vector<8x128xf32>
    %cst_3 = arith.constant 0.000000e+00 : f32
    %11 = vector.broadcast %cst_3 : f32 to vector<8x128xf32>
    %12 = arith.subf %11, %10 : vector<8x128xf32>
    %13 = math.exp %12 : vector<8x128xf32>
    %14 = math.log1p %13 : vector<8x128xf32>
    %cst_4 = arith.constant 0.000000e+00 : f32
    %15 = vector.broadcast %cst_4 : f32 to vector<8x128xf32>
    %16 = arith.maximumf %9, %15 : vector<8x128xf32>
    %17 = arith.mulf %5, %9 : vector<8x128xf32>
    %18 = arith.subf %16, %17 : vector<8x128xf32>
    %19 = arith.addf %18, %14 : vector<8x128xf32>
    %cst_5 = arith.constant 0.000000e+00 : f32
    %20 = vector.broadcast %cst_5 : f32 to vector<8x128xf32>
    %21 = arith.subf %20, %19 : vector<8x128xf32>
    %22 = math.exp %21 : vector<8x128xf32>
    %cst_6 = arith.constant 1.000000e+00 : f32
    %23 = vector.broadcast %cst_6 : f32 to vector<8x128xf32>
    %24 = arith.subf %23, %22 : vector<8x128xf32>
    %cst_7 = arith.constant 0.000000e+00 : f32
    %25 = vector.broadcast %cst_7 : f32 to vector<8x128xf32>
    %26 = arith.maximumf %24, %25 : vector<8x128xf32>
    %27 = arith.mulf %26, %26 : vector<8x128xf32>
    %cst_8 = arith.constant -5.000000e-01 : f32
    %28 = vector.broadcast %cst_8 : f32 to vector<8x128xf32>
    %29 = arith.mulf %28, %5 : vector<8x128xf32>
    %cst_9 = arith.constant 7.500000e-01 : f32
    %30 = vector.broadcast %cst_9 : f32 to vector<8x128xf32>
    %31 = arith.addf %30, %29 : vector<8x128xf32>
    %32 = arith.mulf %27, %31 : vector<8x128xf32>
    %33 = arith.mulf %32, %19 : vector<8x128xf32>
    %34 = vector.shape_cast %33 : vector<8x128xf32> to vector<1x8x128xf32>
    %cst_10 = arith.constant dense<0.000000e+00> : vector<8x128xf32>
    %35 = vector.multi_reduction <add>, %34, %cst_10 [0] : vector<1x8x128xf32> to vector<8x128xf32>
    %36 = arith.addf %0, %35 : vector<8x128xf32>
    %c0_11 = arith.constant 0 : index
    %c0_12 = arith.constant 0 : index
    %37 = vector.load %arg3[%c0_11, %c0_12] : memref<8x128xf32, #tpu.memory_space<vmem>>, vector<8x128xf32>
    tpu.vector_store %arg3[%c0_11, %c0_12], %36 {strides = array<i32>} : memref<8x128xf32, #tpu.memory_space<vmem>>, vector<8x128xf32>,
    return
  }
  func.func @transform_0(%arg0: i32) -> (i32, i32) {
    %c0_i32 = arith.constant 0 : i32
    %c0_i32_0 = arith.constant 0 : i32
    return %arg0, %c0_i32 : i32, i32
  }
  func.func @transform_1(%arg0: i32) -> (i32, i32) {
    %c0_i32 = arith.constant 0 : i32
    %c0_i32_0 = arith.constant 0 : i32
    return %arg0, %c0_i32 : i32, i32
  }
  func.func @transform_2(%arg0: i32) -> (i32, i32) {
    %c0_i32 = arith.constant 0 : i32
    %c0_i32_0 = arith.constant 0 : i32
    return %arg0, %c0_i32 : i32, i32
  }
}

</mosaic_0001>

<llo_original>
// kernel: tpu_custom_call.1
$region0: #{tpu_custom_call.1}
  #allocation0 [shape = 'u32[]', space=smem, size = 0x4, offset = 0x4, fixed_abs, tag = 'smem constant byte address 0x4 - core index']
  #allocation1 [shape = 'u32[144,128]{1,0:T(1,128)}', space=vmem, size = 0x12000, scoped, tag = 'internal scratch']
  %s0 = inlined_call_operand.hbm [shape: f32[16,128], index: 0, kind: input, shape index: {}]
  %s1 = inlined_call_operand.hbm [shape: f32[16,128], index: 1, kind: input, shape index: {}]
  %s2 = inlined_call_operand.hbm [shape: f32[16,128], index: 2, kind: output, shape index: {}]
  %s3 = sld [smem:[#allocation0]]
  $region49: #{tpu_custom_call.1} parent=0
    _
  %s5 = ssub.s32 1, %s3
  %s6 = scalar_select 0, %s5, %s3
  $region1: #{tpu_custom_call.1} parent=0
    #allocation2 [shape = 'u8[8192]{0}', space=vmem, size = 0x2000, scoped, tag = 'input window, operand 0']
    #allocation3 [shape = 's32[2]{0}', space=sflag, size = 0x8, scoped, tag = 'scoped memory for tpu_custom_call.1']
    #allocation4 [shape = 's32[2]{0}', space=sflag, size = 0x8, scoped, tag = 'scoped memory for tpu_custom_call.1']
    #allocation5 [shape = 'u8[8192]{0}', space=vmem, size = 0x2000, scoped, tag = 'input window, operand 1']
    #allocation6 [shape = 's32[2]{0}', space=sflag, size = 0x8, scoped, tag = 'scoped memory for tpu_custom_call.1']
    #allocation7 [shape = 'u8[8192]{0}', space=vmem, size = 0x2000, scoped, tag = 'output window, operand 0']
    %7 = vsyncpa [#allocation3], 0
    %s8 = scalar_lea.sflag [#allocation3], 1
    %9 = vsyncpa %s8, 0
    %10 = vsyncpa [#allocation6], 0
    %s11 = scalar_lea.sflag [#allocation6], 1
    %12 = vsyncpa %s11, 0
    %13 = vsyncpa [#allocation4], 0
    %s14 = scalar_lea.sflag [#allocation4], 1
    %15 = vsyncpa %s14, 0
    loop: start=0, step=1, limit=4
    $region2: #{tpu_custom_call.1} parent=1 // loop_pre_header
      _
    $region3: #{tpu_custom_call.1} parent=1 // loop_header
      %s17 = sphi 0, %s21
      %p18 = scmp.ge.s32.totalorder %s17, 4
      %s27 = sphi 0, %s29
      %s30 = sphi 0, %s27
      %s31 = sphi 0, %s30
      %s47 = sphi 0, %s31
      %s53 = sphi 0, %s55
      %s56 = sphi 0, %s53
      %s57 = sphi 0, %s56
      %s73 = sphi 0, %s57
      %s79 = sphi 0, %s81
      %s82 = sphi 0, %s79
      %s83 = sphi 0, %s82
      %s99 = sphi 0, %s83
    $region4: #{tpu_custom_call.1} parent=1 // loop_header_branch
      %20 = sbr.rel (%p18) target = $region8
    $region5: #{tpu_custom_call.1} parent=1 // loop_body
      %s22 = ssub.s32 %s17, 1
      %s23 = ssub.s32 %s17, 2
      %s24 = sadd.s32 %s17, 1
      %s25 = ssub.s32 %s17, %s24
      %p26 = scmp.eq.s32.totalorder %s25, 0
      %s28 = sadd.s32 %s27, 1
      %s29 = scalar_select %p26, %s27, %s28
      %p32 = pneg %p26
      %p33 = scmp.eq.s32.totalorder %s17, 1
      %p34 = por %p32, %p33
      %p35 = scmp.ne.s32.totalorder %s27, %s30
      %p36 = scmp.eq.s32.totalorder %s17, 0
      %p37 = por %p35, %p36
      %p38 = scmp.ne.s32.totalorder %s27, %s30
      %p39 = scmp.eq.s32.totalorder %s22, 1
      %p40 = por %p38, %p39
      %p41 = scmp.ne.s32.totalorder %s30, %s31
      %p42 = scmp.eq.s32.totalorder %s22, 0
      %p43 = por %p41, %p42
      %p44 = scmp.ne.s32.totalorder %s30, %s31
      %p45 = scmp.eq.s32.totalorder %s23, 1
      %p46 = por %p44, %p45
      %p48 = scmp.ne.s32.totalorder %s31, %s47
      %p49 = scmp.eq.s32.totalorder %s23, 0
      %p50 = por %p48, %p49
      %s51 = ssub.s32 %s17, %s24
      %p52 = scmp.eq.s32.totalorder %s51, 0
      %s54 = sadd.s32 %s53, 1
      %s55 = scalar_select %p52, %s53, %s54
      %p58 = pneg %p52
      %p59 = scmp.eq.s32.totalorder %s17, 1
      %p60 = por %p58, %p59
      %p61 = scmp.ne.s32.totalorder %s53, %s56
      %p62 = scmp.eq.s32.totalorder %s17, 0
      %p63 = por %p61, %p62
      %p64 = scmp.ne.s32.totalorder %s53, %s56
      %p65 = scmp.eq.s32.totalorder %s22, 1
      %p66 = por %p64, %p65
      %p67 = scmp.ne.s32.totalorder %s56, %s57
      %p68 = scmp.eq.s32.totalorder %s22, 0
      %p69 = por %p67, %p68
      %p70 = scmp.ne.s32.totalorder %s56, %s57
      %p71 = scmp.eq.s32.totalorder %s23, 1
      %p72 = por %p70, %p71
      %p74 = scmp.ne.s32.totalorder %s57, %s73
      %p75 = scmp.eq.s32.totalorder %s23, 0
      %p76 = por %p74, %p75
      %s77 = ssub.s32 %s17, %s24
      %p78 = scmp.eq.s32.totalorder %s77, 0
      %s80 = sadd.s32 %s79, 1
      %s81 = scalar_select %p78, %s79, %s80
      %p84 = pneg %p78
      %p85 = scmp.eq.s32.totalorder %s17, 1
      %p86 = por %p84, %p85
      %p87 = scmp.ne.s32.totalorder %s79, %s82
      %p88 = scmp.eq.s32.totalorder %s17, 0
      %p89 = por %p87, %p88
      %p90 = scmp.ne.s32.totalorder %s79, %s82
      %p91 = scmp.eq.s32.totalorder %s22, 1
      %p92 = por %p90, %p91
      %p93 = scmp.ne.s32.totalorder %s82, %s83
      %p94 = scmp.eq.s32.totalorder %s22, 0
      %p95 = por %p93, %p94
      %p96 = scmp.ne.s32.totalorder %s82, %s83
      %p97 = scmp.eq.s32.totalorder %s23, 1
      %p98 = por %p96, %p97
      %p100 = scmp.ne.s32.totalorder %s83, %s99
      %p101 = scmp.eq.s32.totalorder %s23, 0
      %p102 = por %p100, %p101
      %p103 = scmp.le.s32.totalorder 1, %s17
      %p104 = scmp.lt.s32.totalorder %s17, 3
      %p105 = pnand %p103, %p104
      %p106 = pneg %p105
      // Predicated region
      $region9: #{tpu_custom_call.1} parent=5 // pred_check
        _
      $region10: #{tpu_custom_call.1} parent=5 // pred_check_branch
        %108 = sbr.rel (%p105) target = $region12
      $region11: #{tpu_custom_call.1} parent=5 // pred_region
        %s109 = ssub.s32 %s17, 1
      $region12: #{tpu_custom_call.1} parent=5 // pred_fallthru
        _
      %p110 = scmp.lt.s32.totalorder %s17, 2
      // Predicated region
      $region13: #{tpu_custom_call.1} parent=5 // pred_check
        %p111 = pneg %p110
      $region14: #{tpu_custom_call.1} parent=5 // pred_check_branch
        %113 = sbr.rel (%p111) target = $region16
      $region15: #{tpu_custom_call.1} parent=5 // pred_region
        // Predicated region
        $region17: #{tpu_custom_call.1} parent=15 // pred_check
          %p114 = pneg %p37
        $region18: #{tpu_custom_call.1} parent=15 // pred_check_branch
          %116 = sbr.rel (%p114) target = $region20
        $region19: #{tpu_custom_call.1} parent=15 // pred_region
          %s117 = sand.u32 %s27, 1
          %s118 = scalar_lea.sflag [#allocation3], %s117
          %s119 = sand.u32 %s27, 1
          %s120 = smul.addr %s119, 8
          %s121 = scalar_lea.vmem [#allocation2], %s120
          %s123 = ssub.s32 128, 128
          %124 = vsyncadd %s118, %s123
          %s125 = smul.addr %s17, 128
          %s126 = scalar_lea.hbm %s0, %s125
          %s128 = sshll.u32 %s121, 4
          %s129 = int_to_ptr.vmem [resolvable:$true] %s128
          %131 = dma.hbm_to_vmem [thread:$0]  %s126, 128, %s129, %s118
        $region20: #{tpu_custom_call.1} parent=15 // pred_fallthru
          _
        // Predicated region
        $region21: #{tpu_custom_call.1} parent=15 // pred_check
          %p132 = pneg %p63
        $region22: #{tpu_custom_call.1} parent=15 // pred_check_branch
          %134 = sbr.rel (%p132) target = $region24
        $region23: #{tpu_custom_call.1} parent=15 // pred_region
          %s135 = sand.u32 %s53, 1
          %s136 = scalar_lea.sflag [#allocation6], %s135
          %s137 = sand.u32 %s53, 1
          %s138 = smul.addr %s137, 8
          %s139 = scalar_lea.vmem [#allocation5], %s138
          %s141 = ssub.s32 128, 128
          %142 = vsyncadd %s136, %s141
          %s143 = smul.addr %s17, 128
          %s144 = scalar_lea.hbm %s1, %s143
          %s146 = sshll.u32 %s139, 4
          %s147 = int_to_ptr.vmem [resolvable:$true] %s146
          %149 = dma.hbm_to_vmem [thread:$0]  %s144, 128, %s147, %s136
        $region24: #{tpu_custom_call.1} parent=15 // pred_fallthru
          _
      $region16: #{tpu_custom_call.1} parent=5 // pred_fallthru
        _
      %p150 = scmp.le.s32.totalorder 1, %s17
      %p151 = scmp.lt.s32.totalorder %s17, 3
      %p152 = pnand %p150, %p151
      %p153 = pneg %p152
      // Predicated region
      $region25: #{tpu_custom_call.1} parent=5 // pred_check
        _
      $region26: #{tpu_custom_call.1} parent=5 // pred_check_branch
        %155 = sbr.rel (%p152) target = $region28
      $region27: #{tpu_custom_call.1} parent=5 // pred_region
        %s156 = ssub.s32 %s17, 1
        %s157 = sand.u32 %s30, 1
        %s158 = scalar_lea.sflag [#allocation3], %s157
        %s159 = sand.u32 %s30, 1
        %s160 = smul.addr %s159, 8
        %s161 = scalar_lea.vmem [#allocation2], %s160
        // Predicated region
        $region29: #{tpu_custom_call.1} parent=27 // pred_check
          %p162 = pneg %p43
        $region30: #{tpu_custom_call.1} parent=27 // pred_check_branch
          %164 = sbr.rel (%p162) target = $region32
        $region31: #{tpu_custom_call.1} parent=27 // pred_region
          %165 = dma.done %s158, 128
        $region32: #{tpu_custom_call.1} parent=27 // pred_fallthru
          _
        %s166 = sand.u32 %s56, 1
        %s167 = scalar_lea.sflag [#allocation6], %s166
        %s168 = sand.u32 %s56, 1
        %s169 = smul.addr %s168, 8
        %s170 = scalar_lea.vmem [#allocation5], %s169
        // Predicated region
        $region33: #{tpu_custom_call.1} parent=27 // pred_check
          %p171 = pneg %p69
        $region34: #{tpu_custom_call.1} parent=27 // pred_check_branch
          %173 = sbr.rel (%p171) target = $region36
        $region35: #{tpu_custom_call.1} parent=27 // pred_region
          %174 = dma.done %s167, 128
        $region36: #{tpu_custom_call.1} parent=27 // pred_fallthru
          _
        %s175 = sand.u32 %s30, 1
        %s176 = scalar_lea.sflag [#allocation3], %s175
        %s177 = sand.u32 %s30, 1
        %s178 = smul.addr %s177, 8
        %s179 = scalar_lea.vmem [#allocation2], %s178
        %p180 = pneg %p43
        %p181 = pneg %p40
        %s182 = sand.u32 %s56, 1
        %s183 = scalar_lea.sflag [#allocation6], %s182
        %s184 = sand.u32 %s56, 1
        %s185 = smul.addr %s184, 8
        %s186 = scalar_lea.vmem [#allocation5], %s185
        %p187 = pneg %p69
        %p188 = pneg %p66
        %p189 = pneg %p95
        %p190 = pneg %p92
        %s191 = sand.u32 %s82, 1
        %s192 = scalar_lea.sflag [#allocation4], %s191
        %s193 = sand.u32 %s82, 1
        %s194 = smul.addr %s193, 8
        %s195 = scalar_lea.vmem [#allocation7], %s194
        %v196 = vld [vmem:[%s161] sm:$0xff]
        %v197 = vld [vmem:[%s170] sm:$0xff]
        %v198 = vmax.f32 %v196, -100.0
        %v199 = vmin.f32 %v198, 100.0
        %v200 = vand.u32 2147483647, %v199
        %v201 = vsub.f32 0.0, %v200
        %v202 = vmul.f32 %v201, 1.442695
        %v203 = vpow.pop %v202
        %v204 = vadd.f32 %v203, 1.0
        %v205 = vlog2.pop %v204
        %v206 = vmul.f32 %v205, 0.6931472
        %v207 = vmul.f32 -0.5, %v203
        %v208 = vadd.f32 %v207, 1.0
        %v209 = vmul.f32 %v208, %v203
        %v210 = vand.u32 2147483647, %v203
        %vm211 = vcmp.lt.f32.partialorder %v210, 0.0004427343
        %v212 = vsel %vm211, %v209, %v206
        %v213 = vmax.f32 %v199, 0.0
        %v214 = vmul.f32 %v197, %v199
        %v215 = vsub.f32 %v213, %v214
        %v216 = vadd.f32 %v215, %v212
        %v217 = vsub.f32 0.0, %v216
        %v218 = vmul.f32 %v217, 1.442695
        %v219 = vpow.pop %v218
        %v220 = vsub.f32 1.0, %v219
        %v221 = vmax.f32 %v220, 0.0
        %v222 = vmul.f32 %v221, %v221
        %v223 = vmul.f32 %v197, -0.5
        %v224 = vadd.f32 %v223, 0.75
        %v225 = vmul.f32 %v222, %v224
        %v226 = vmul.f32 %v225, %v216
        %v227 = vadd.f32 %v226, 0.0
        %v228 = vadd.f32 %v227, 0.0
        %229 = vst [vmem:[%s195] sm:$0xff] %v228
        %s230 = sand.u32 %s82, 1
        %s231 = scalar_lea.sflag [#allocation4], %s230
        %s232 = sand.u32 %s82, 1
        %s233 = smul.addr %s232, 8
        %s234 = scalar_lea.vmem [#allocation7], %s233
        // Predicated region
        $region37: #{tpu_custom_call.1} parent=27 // pred_check
          %p235 = pneg %p92
        $region38: #{tpu_custom_call.1} parent=27 // pred_check_branch
          %237 = sbr.rel (%p235) target = $region40
        $region39: #{tpu_custom_call.1} parent=27 // pred_region
          %s239 = ssub.s32 128, 128
          %240 = vsyncadd %s231, %s239
          %s241 = smul.addr %s22, 128
          %s242 = scalar_lea.hbm %s2, %s241
          %s244 = sshll.u32 %s234, 4
          %s245 = int_to_ptr.vmem [resolvable:$true] %s244
          %247 = dma.vmem_to_hbm [thread:$0]  %s245, 128, %s242, %s231
        $region40: #{tpu_custom_call.1} parent=27 // pred_fallthru
          _
      $region28: #{tpu_custom_call.1} parent=5 // pred_fallthru
        _
      %p248 = scmp.le.s32.totalorder 2, %s17
      // Predicated region
      $region41: #{tpu_custom_call.1} parent=5 // pred_check
        %p249 = pneg %p248
      $region42: #{tpu_custom_call.1} parent=5 // pred_check_branch
        %251 = sbr.rel (%p249) target = $region44
      $region43: #{tpu_custom_call.1} parent=5 // pred_region
        %s252 = ssub.s32 %s17, 2
        // Predicated region
        $region45: #{tpu_custom_call.1} parent=43 // pred_check
          %p253 = pneg %p98
        $region46: #{tpu_custom_call.1} parent=43 // pred_check_branch
          %255 = sbr.rel (%p253) target = $region48
        $region47: #{tpu_custom_call.1} parent=43 // pred_region
          %s256 = sand.u32 %s83, 1
          %s257 = scalar_lea.sflag [#allocation4], %s256
          %s258 = sand.u32 %s83, 1
          %s259 = smul.addr %s258, 8
          %s260 = scalar_lea.vmem [#allocation7], %s259
          %261 = dma.done %s257, 128
        $region48: #{tpu_custom_call.1} parent=43 // pred_fallthru
          _
      $region44: #{tpu_custom_call.1} parent=5 // pred_fallthru
        _
    $region6: #{tpu_custom_call.1} parent=1 // loop_footer
      %s21 = sadd.s32 1, %s17
    $region7: #{tpu_custom_call.1} parent=1 // loop_footer_branch
      %16 = sbr.rel target = $region3
    $region8: #{tpu_custom_call.1} parent=1 // loop_exit
      _
    %262 = vsyncpa [#allocation3], 1
    %s263 = scalar_lea.sflag [#allocation3], 1
    %264 = vsyncpa %s263, 1
    %265 = vsyncpa [#allocation6], 1
    %s266 = scalar_lea.sflag [#allocation6], 1
    %267 = vsyncpa %s266, 1
    %268 = vsyncpa [#allocation4], 1
    %s269 = scalar_lea.sflag [#allocation4], 1
    %270 = vsyncpa %s269, 1

</llo_original>
